<compile_context>
chip_gen: v5e
topology: v5e:2x2
jax: 0.10.0
libtpu: 0.0.40
codegen_flags: <defaults>
</compile_context>

<pallas_src>
import jax
import jax.numpy as jnp
from jax.experimental import pallas as pl
from jax.experimental.pallas import tpu as pltpu

_MIB = 1024 * 1024


def _cdiv(a, b):
    return -(-a // b)


def _round_up(a, m):
    return _cdiv(a, m) * m


def _vmem_params():
    """Scoped-VMEM limit + tile budget, per chip generation."""
    try:
        cap = int(getattr(pltpu.get_tpu_info(), "vmem_capacity_bytes", 0)) or 64 * _MIB
    except Exception:  # conservative fallback (v7x-sized VMEM)
        cap = 64 * _MIB
    # ~62% of physical VMEM: 80 MiB on v5e/v6e (128 MiB phys), 40 MiB on v7x (64 MiB).
    vmem_limit = max(32 * _MIB, min((cap * 5) // 8, 96 * _MIB))
    # ~70% of that for the tiles / intermediates; rest is headroom for the tiny
    # output block, scratch accumulator, semaphores and compiler scratch.
    budget = (vmem_limit * 7) // 10
    return vmem_limit, budget


# --------------------------------------------------------------------------- #
# Kernels
# --------------------------------------------------------------------------- #
def _make_fullrow_kernel(inv_hw):
    """g_k == 1: each grid step reduces full (tm, hw) rows. No carry, no scratch."""

    def kernel(x_ref, o_ref):
        x = x_ref[...].astype(jnp.float32)            # fused upcast + row reduce
        o_ref[0, :] = (jnp.sum(x, axis=-1) * inv_hw).astype(o_ref.dtype)

    return kernel


def _make_chunked_kernel(hw, tm, tk, inv_hw, needs_mask):
    """g_k > 1: chunk the H*W axis; accumulate 128-lane slices into (tm,128) f32."""
    n_slices = tk // 128  # tk is always a multiple of 128 here (<= 64 slices)

    def _accumulate(x_ref, acc_ref, k, masked):
        # Pure VALU adds on (tm, 128) slices: no per-step XLU reduce, and the live
        # f32 intermediate is bounded to a single (tm, 128) slice.
        for j in range(n_slices):
            xs = x_ref[:, j * 128:(j + 1) * 128].astype(jnp.float32)
            if masked:
                col = (k * tk + j * 128
                       + jax.lax.broadcasted_iota(jnp.int32, (tm, 128), 1))
                xs = jnp.where(col < hw, xs, 0.0)
            acc_ref[...] += xs

    def kernel(x_ref, o_ref, acc_ref):
        k = pl.program_id(1)
        nk = pl.num_programs(1)

        @pl.when(k == 0)
        def _init():
            acc_ref[...] = jnp.zeros_like(acc_ref)

        if needs_mask:
            # Mask only the tail chunk; all other steps run the plain sum.
            @pl.when(k < nk - 1)
            def _plain():
                _accumulate(x_ref, acc_ref, k, masked=False)

            @pl.when(k == nk - 1)
            def _tail():
                _accumulate(x_ref, acc_ref, k, masked=True)
        else:
            _accumulate(x_ref, acc_ref, k, masked=False)

        @pl.when(k == nk - 1)
        def _finalize():
            # Single cross-lane reduce + relayout, once per row block.
            total = jnp.sum(acc_ref[...], axis=-1)    # (tm,)
            o_ref[0, :] = (total * inv_hw).astype(o_ref.dtype)

    return kernel


# --------------------------------------------------------------------------- #
# Wrapper
# --------------------------------------------------------------------------- #
def gap(x, *, _tiles=None):
    """Global average pooling over spatial dims of an NCHW tensor -> (N, C, 1, 1)."""
    n, c, h, w = x.shape
    r = n * c
    hw = h * w
    xf = x.reshape(r, hw)  # free on contiguous NCHW
    itemsize = xf.dtype.itemsize
    inv_hw = 1.0 / float(hw)

    vmem_limit, budget = _vmem_params()
    hw_pad = _round_up(hw, 128)
    # Per-row VMEM cost of a full-row tile: double-buffered input (lane-padded)
    # plus, for sub-32-bit inputs, the whole-tile f32 upcast of the fused reduce.
    f32_extra = 4 if itemsize < 4 else 0
    row_cost = hw_pad * (2 * itemsize + f32_extra)

    # ---- tile selection ---------------------------------------------------
    if _tiles is not None:
        tm, tk = _tiles                                   # testing override
        g_rows, g_k = _cdiv(r, tm), _cdiv(hw, tk)
    elif r <= 256 and r * row_cost <= budget:
        # Small problem: single block (no dual-TC concern below ~256 rows).
        tm, tk = r, hw
        g_rows, g_k = 1, 1
    else:
        rows_fit = budget // row_cost
        if rows_fit >= 128:
            # Full-row tiles. Cap at 1024 rows (roofline already ~86% there).
            tm = min(1024, (rows_fit // 128) * 128)
            tm = min(tm, max(128, _round_up(r, 128)))
            if r > 256:
                # Guarantee >= 2 row blocks so both v7x TensorCores stream HBM.
                tm = min(tm, _round_up(_cdiv(r, 2), 128))
            tm = max(tm, 128)
            g_rows = _cdiv(r, tm)
            # Prefer an even number of row blocks (dual-TC load balance).
            if g_rows > 1 and g_rows % 2 == 1 and r > 256:
                tm2 = _round_up(_cdiv(r, g_rows + 1), 128)
                if tm2 >= 128 and _cdiv(r, tm2) % 2 == 0:
                    tm = tm2
                    g_rows = _cdiv(r, tm)
            tk, g_k = hw, 1
        else:
            # Huge spatial maps: chunk H*W as an 'arbitrary' reduction axis.
            tm = min(128, _round_up(r, 8))
            acc_bytes = tm * 128 * 4
            tk_cap = max(128, (budget - acc_bytes) // (2 * tm * itemsize))
            # <= 64 column slices per chunk keeps the unrolled add loop small
            # while each double-buffered chunk is still multi-MiB.
            tk = max(128, min(64 * 128, (tk_cap // 128) * 128))
            if tk >= hw:
                tk, g_k = hw, 1
            else:
                g_k = _cdiv(hw, tk)
            g_rows = _cdiv(r, tm)

    out_cols = g_rows * tm
    cost = pl.CostEstimate(
        flops=r * hw,
        transcendentals=0,
        bytes_accessed=r * hw * itemsize + r * itemsize,
    )

    if g_k == 1:
        out2d = pl.pallas_call(
            _make_fullrow_kernel(inv_hw),
            out_shape=jax.ShapeDtypeStruct((1, out_cols), xf.dtype),
            grid_spec=pltpu.PrefetchScalarGridSpec(
                num_scalar_prefetch=0,
                grid=(g_rows,),
                in_specs=[pl.BlockSpec((tm, tk), lambda i: (i, 0))],
                out_specs=pl.BlockSpec((1, tm), lambda i: (0, i)),
            ),
            compiler_params=pltpu.CompilerParams(
                dimension_semantics=("parallel",),
                vmem_limit_bytes=vmem_limit,
            ),
            cost_estimate=cost,
        )(xf)
    else:
        needs_mask = (hw % tk) != 0
        out2d = pl.pallas_call(
            _make_chunked_kernel(hw, tm, tk, inv_hw, needs_mask),
            out_shape=jax.ShapeDtypeStruct((1, out_cols), xf.dtype),
            grid_spec=pltpu.PrefetchScalarGridSpec(
                num_scalar_prefetch=0,
                grid=(g_rows, g_k),  # reduction axis last
                in_specs=[pl.BlockSpec((tm, tk), lambda i, k: (i, k))],
                out_specs=pl.BlockSpec((1, tm), lambda i, k: (0, i)),
                scratch_shapes=[pltpu.VMEM((tm, 128), jnp.float32)],
            ),
            compiler_params=pltpu.CompilerParams(
                dimension_semantics=("parallel", "arbitrary"),
                vmem_limit_bytes=vmem_limit,
            ),
            cost_estimate=cost,
        )(xf)

    # Lane-dense (1, g_rows*tm) -> (N, C, 1, 1); drop row padding if any.
    return out2d[0, :r].reshape(n, c, 1, 1)


if __name__ == "__main__":
    key = jax.random.PRNGKey(0)

    # 1) Standard path (single-block full-row kernel).
    x = jax.random.normal(key, (2, 4, 16, 16), dtype=jnp.float32)
    out = jax.block_until_ready(jax.jit(gap)(x))
    ref = jnp.mean(x, axis=(2, 3), keepdims=True)
    assert out.shape == (2, 4, 1, 1), out.shape
    assert out.dtype == x.dtype, out.dtype
    assert jnp.allclose(out, ref, atol=1e-5, rtol=1e-5), "mismatch vs reference (full-row)"

    # 2) Chunked-reduction path, exact chunking (no tail mask).
    k2 = jax.random.fold_in(key, 1)
    x2 = jax.random.normal(k2, (2, 4, 16, 32), dtype=jnp.float32)  # hw = 512
    out2 = jax.block_until_ready(gap(x2, _tiles=(8, 256)))
    ref2 = jnp.mean(x2, axis=(2, 3), keepdims=True)
    assert jnp.allclose(out2, ref2, atol=1e-5, rtol=1e-5), "mismatch vs reference (chunked)"

    # 3) Chunked-reduction path with a masked tail chunk.
    k3 = jax.random.fold_in(key, 2)
    x3 = jax.random.normal(k3, (2, 4, 16, 24), dtype=jnp.float32)  # hw = 384, tk = 256
    out3 = jax.block_until_ready(gap(x3, _tiles=(8, 256)))
    ref3 = jnp.mean(x3, axis=(2, 3), keepdims=True)
    assert jnp.allclose(out3, ref3, atol=1e-5, rtol=1e-5), "mismatch vs reference (masked tail)"

    # 4) bfloat16 input (f32 accumulation inside the kernel).
    x4 = x.astype(jnp.bfloat16)
    out4 = jax.block_until_ready(jax.jit(gap)(x4))
    ref4 = jnp.mean(x4.astype(jnp.float32), axis=(2, 3), keepdims=True).astype(jnp.bfloat16)
    assert out4.dtype == jnp.bfloat16
    assert jnp.allclose(out4.astype(jnp.float32), ref4.astype(jnp.float32),
                        atol=2e-2, rtol=2e-2), "mismatch vs reference (bf16)"

    print("KERNEL_OK")
</pallas_src>

<mosaic_0001>
module attributes {stable_mosaic.version = 11 : i64} {
  func.func @kernel(%arg0: i32, %arg1: memref<8x256xf32, #tpu.memory_space<vmem>>, %arg2: memref<1x8xf32, #tpu.memory_space<vmem>>) attributes {dimension_semantics = [#tpu.dimension_semantics<parallel>], iteration_bounds = array<i64: 1>, scalar_prefetch = 0 : i64, scratch_operands = 0 : i64, tpu.core_type = #tpu.core_type<tc>, window_params = [{transform_indices = @transform_0, window_bounds = array<i64: 8, 256>}, {transform_indices = @transform_1, window_bounds = array<i64: 1, 8>}]} {
    %c0 = arith.constant 0 : index
    %c0_0 = arith.constant 0 : index
    %0 = vector.load %arg1[%c0, %c0_0] : memref<8x256xf32, #tpu.memory_space<vmem>>, vector<8x256xf32>
    %cst = arith.constant dense<0.000000e+00> : vector<8xf32>
    %1 = vector.multi_reduction <add>, %0, %cst [1] : vector<8x256xf32> to vector<8xf32>
    %cst_1 = arith.constant 3.906250e-03 : f32
    %2 = vector.broadcast %cst_1 : f32 to vector<8xf32>
    %3 = arith.mulf %1, %2 : vector<8xf32>
    %c0_2 = arith.constant 0 : index
    %c0_3 = arith.constant 0 : index
    %4 = vector.load %arg2[%c0_2, %c0_3] : memref<1x8xf32, #tpu.memory_space<vmem>>, vector<1x8xf32>
    %5 = vector.shape_cast %4 : vector<1x8xf32> to vector<8xf32>
    %6 = vector.shape_cast %3 : vector<8xf32> to vector<1x8xf32>
    tpu.vector_store %arg2[%c0_2, %c0_3], %6 {strides = array<i32>} : memref<1x8xf32, #tpu.memory_space<vmem>>, vector<1x8xf32>,
    return
  }
  func.func @transform_0(%arg0: i32) -> (i32, i32) {
    %c0_i32 = arith.constant 0 : i32
    %c0_i32_0 = arith.constant 0 : i32
    return %arg0, %c0_i32 : i32, i32
  }
  func.func @transform_1(%arg0: i32) -> (i32, i32) {
    %c0_i32 = arith.constant 0 : i32
    %c0_i32_0 = arith.constant 0 : i32
    return %c0_i32, %arg0 : i32, i32
  }
}

</mosaic_0001>

<llo_original>
// kernel: squeeze.1
$region0: #{squeeze.1}
  %s0 = inlined_call_operand.vmem [shape: f32[8], index: 0, kind: input, shape index: {}]
  %s1 = inlined_call_operand.hbm [shape: f32[2,4,1,1], index: 1, kind: output, shape index: {}]
  $region1: #{squeeze.1} parent=0
    #allocation0 [shape = 'u8[1024]{0}', space=vmem, size = 0x400, scoped, tag = 'operand span for operand 1']
    #allocation1 [shape = 's32[1]{0}', space=sflag, size = 0x4, scoped, tag = 'scoped memory for squeeze.1']
    #allocation2 [shape = 'u8[4096]{0}', space=vmem, size = 0x1000, scoped, tag = 'scoped mem for output reshape']
    #allocation3 [shape = 'u8[4096]{0}', space=vmem, size = 0x1000, scoped, tag = 'scoped mem for input reshape']
    %2 = vsyncpa [#allocation1], 0
    %s4 = ssub.s32 2, 1
    %v5 = vld [vmem:[%s0] sm:%s4]
    %6 = vst [vmem:[#allocation3] sm:%s4] %v5
    %v7 = vld [vmem:[#allocation3] sm:$0x1]
    %vm8 = vcmask 31744
    %9 = vst.msk [vmem:[#allocation2] sm:$0x1] %vm8, %v7
    %v10 = vld [vmem:[#allocation3] sm:$0x1]
    %11 = vrot.lane.b32.xlu0 %v10, 124
    %v12 = vpop.permute.xlu0 %11
    %vm13 = vcmask 31744
    %s14 = scalar_lea.vmem [#allocation2], 1
    %15 = vst.msk [vmem:[%s14] sm:$0x1] %vm13, %v12
    %s17 = ssub.s32 4, 1
    %v18 = vld [vmem:[#allocation2] sm:%s17]
    %s20 = ssub.s32 4, 1
    %21 = vst [vmem:[#allocation0] sm:%s20] %v18
    %23 = vsyncadd [#allocation1], 0
    %s25 = sshll.u32 [#allocation0], 4
    %s26 = int_to_ptr.vmem [resolvable:$true] %s25
    %s27 = sshll.u32 %s1, 4
    %s28 = int_to_ptr.hbm [resolvable:$true] %s27
    %30 = dma.vmem_to_hbm [thread:$0]  %s26, 32, %s28, [#allocation1]
    %32 = dma.done [#allocation1], 32
    %33 = vsyncpa [#allocation1], 1

// kernel: gap.1
$region0: #{gap.1}
  #allocation0 [shape = 'u32[]', space=smem, size = 0x4, offset = 0x4, fixed_abs, tag = 'smem constant byte address 0x4 - core index']
  #allocation1 [shape = 'u32[72,128]{1,0:T(1,128)}', space=vmem, size = 0x9000, scoped, tag = 'internal scratch']
  %s0 = inlined_call_operand.vmem [shape: f32[8,256], index: 0, kind: input, shape index: {}]
  %s1 = inlined_call_operand.vmem [shape: f32[1,8], index: 1, kind: output, shape index: {}]
  %s2 = sld [smem:[#allocation0]]
  $region14: #{gap.1} parent=0
    _
  %s4 = ssub.s32 1, %s2
  %s5 = scalar_select 0, %s4, %s2
  // Predicated region
  $region2: #{gap.1} parent=0 // pred_check
    _
  $region3: #{gap.1} parent=0 // pred_check_branch
    %7 = sbr.rel (0) target = $region5
  $region4: #{gap.1} parent=0 // pred_region
    _
  $region5: #{gap.1} parent=0 // pred_fallthru
    _
  %v8 = vld [vmem:[%s0] sm:$0xff]
  %v9 = vld [vmem:[%s0 + $0x8] sm:$0xff]
  %v10 = vadd.f32 %v8, %v9
  %11 = vadd.xlane.f32.xlu0 %v10
  %v12 = vpop.xlane.xlu0 %11
  %v13 = vmul.f32 %v12, 0.00390625
  %v15 = vlaneseq
  %v16 = vand.u32 %v15, 127
  %v17 = vperm.slane %v13, %v16
  %vm19 = vcmask 57344
  %20 = vst.msk [vmem:[%s1] sm:$0x1] %vm19, %v17
  // Predicated region
  $region6: #{gap.1} parent=0 // pred_check
    _
  $region7: #{gap.1} parent=0 // pred_check_branch
    %22 = sbr.rel (0) target = $region9
  $region8: #{gap.1} parent=0 // pred_region
    _
  $region9: #{gap.1} parent=0 // pred_fallthru
    _
  // Predicated region
  $region10: #{gap.1} parent=0 // pred_check
    _
  $region11: #{gap.1} parent=0 // pred_check_branch
    %24 = sbr.rel (0) target = $region13
  $region12: #{gap.1} parent=0 // pred_region
    _
  $region13: #{gap.1} parent=0 // pred_fallthru
    _

</llo_original>
